<compile_context>
chip_gen: v5e
topology: v5e:2x2
jax: 0.10.0
libtpu: 0.0.40
codegen_flags: <defaults>
</compile_context>

<pallas_src>
import numpy as np
import jax
import jax.numpy as jnp
from jax.experimental import pallas as pl
from jax.experimental.pallas import tpu as pltpu


def _round_up(v, m):
    return int((v + m - 1) // m * m)


def _const_block_spec(shape):
    """Spec for a grid-invariant operand (weights / BN shift): single-buffer it."""
    try:
        return pl.BlockSpec(shape, lambda *_: (0,) * len(shape),
                            pipeline_mode=pl.Buffered(1))
    except Exception:  # older jax without pipeline_mode / Buffered: fall back to default
        return pl.BlockSpec(shape, lambda *_: (0,) * len(shape))


def _fold_bn_layers(layers, c_in0, eps, lane, w_dtype):
    """Fold eval-mode BatchNorm1d into the bias-free Linear of each MLP and pad channels.

    BN(y @ W) = (y @ W) * scale + (beta - mean * scale),  scale = gamma / sqrt(var + eps)
    Returns [(W_folded (cin_pad, cout_pad) w_dtype, shift (1, cout_pad) f32), ...].
    """
    folded, c_in_pad = [], c_in0
    for (w, gamma, beta, mean, var) in layers:
        cin, cout = w.shape
        cout_p = _round_up(cout, lane)
        scale = gamma / jnp.sqrt(var + eps)
        wf = jnp.pad(w * scale[None, :],
                     ((0, c_in_pad - cin), (0, cout_p - cout))).astype(w_dtype)
        shift = jnp.pad(beta - mean * scale, (0, cout_p - cout)).astype(jnp.float32)[None, :]
        folded.append((wf, shift))
        c_in_pad = cout_p
    return folded


def _derive_tile_and_vmem(M, K, Cf_p, w_shapes, c_out_p, in_itemsize, tm_target):
    """Generation-aware M-tile / vmem_limit: fit under ~3/4 of physical VMEM, keep >=2 steps."""
    try:
        vmem_cap = int(pltpu.get_tpu_info().vmem_capacity_bytes)   # 128 MiB v5e/v6e, 64 MiB v7x
    except Exception:
        vmem_cap = 64 * 1024 * 1024                                # conservative fallback
    vmem_limit = min((vmem_cap * 3) // 4, 96 * 1024 * 1024)
    budget = (vmem_limit * 4) // 5

    w_bytes = sum(ci * co for ci, co in w_shapes) * in_itemsize \
        + sum(co for _, co in w_shapes) * 4                        # Buffered(1) weights + f32 shifts
    max_co = max(co for _, co in w_shapes)

    def need(tm):
        g = 2 * K * tm * Cf_p * in_itemsize      # gathered block, double-buffered
        pb = 2 * tm * Cf_p * 4                   # centre-xyz block (f32), double-buffered
        ob = 2 * tm * c_out_p * 4                # f32 output block, double-buffered
        inter = 2 * tm * max_co * 4              # per-layer f32 temporaries (headroom)
        return g + pb + ob + inter + w_bytes

    tm = min(tm_target, _round_up(M, 8))
    while tm > 8 and need(tm) > budget:
        tm = max(8, _round_up(tm // 2, 8))
    # keep >= 2 grid steps so ("parallel",) actually shards across both v7x TensorCores
    if _round_up(M, tm) // tm < 2 and M > 8:
        tm = max(8, _round_up((M + 1) // 2, 8))
    return tm, int(vmem_limit)


def make_local_agg_kernel(K, n_layers, compute_dtype):
    def kernel(grouped_ref, ppad_ref, *rest):
        out_ref = rest[-1]
        # K-neighbour max pool: pairwise tree of lane-dense (tm, Cf) VPU maxima.
        # Upcast the slabs to f32 first (max is exact; keeps v5e off packed-bf16 VPU ops).
        slabs = [grouped_ref[kk].astype(jnp.float32) for kk in range(K)]
        while len(slabs) > 1:
            nxt = [jnp.maximum(slabs[2 * i], slabs[2 * i + 1]) for i in range(len(slabs) // 2)]
            if len(slabs) & 1:
                nxt.append(slabs[-1])
            slabs = nxt
        # relative-xyz inside the kernel: max_k(p_nbr - p_ctr) == max_k(p_nbr) - p_ctr
        # (feature columns of ppad are zero, so they pass through untouched).
        y = (slabs[0] - ppad_ref[...]).astype(compute_dtype)
        # convs: Linear(bias=False) with eval-BN scale pre-folded into W, + shift, + ReLU.
        for l in range(n_layers):
            w_ref, s_ref = rest[2 * l], rest[2 * l + 1]
            z = jnp.dot(y, w_ref[...], preferred_element_type=jnp.float32)
            z = jnp.maximum(z + s_ref[...], 0.0)
            y = z.astype(compute_dtype) if l + 1 < n_layers else z
        out_ref[...] = y.astype(out_ref.dtype)
    return kernel


def local_aggregation_pallas(grouped_kmc, p_ctr, layers, *, eps=1e-5, tm_target=512,
                             lane=128, compute_dtype=jnp.bfloat16):
    """grouped_kmc: (K, M, Cf) neighbour rows of [xyz || feat], Cf = 3 + C_in.
    p_ctr: (M, 3) centre coordinates. layers: [(W(cin,cout), gamma, beta, mean, var), ...]."""
    K, M, Cf = grouped_kmc.shape
    # lane-pad the contraction dim only when big enough to matter (skip tiny Cf like 7).
    Cf_p = _round_up(Cf, lane) if Cf >= 64 else Cf

    folded = _fold_bn_layers(layers, Cf_p, eps, lane, compute_dtype)
    c_out = layers[-1][0].shape[1]
    c_out_p = folded[-1][0].shape[1]

    in_itemsize = np.dtype(compute_dtype).itemsize
    tm, vmem_limit = _derive_tile_and_vmem(M, K, Cf_p, [w.shape for w, _ in folded],
                                           c_out_p, in_itemsize, tm_target)
    Mp = _round_up(M, tm)

    grouped = grouped_kmc.astype(compute_dtype)
    if Mp > M or Cf_p > Cf:
        grouped = jnp.pad(grouped, ((0, 0), (0, Mp - M), (0, Cf_p - Cf)))
    p_pad = jnp.pad(p_ctr.astype(jnp.float32), ((0, Mp - M), (0, Cf_p - 3)))

    in_specs = [pl.BlockSpec((K, tm, Cf_p), lambda i: (0, i, 0)),   # neighbour slabs
                pl.BlockSpec((tm, Cf_p), lambda i: (i, 0))]         # centre xyz (zero-padded)
    operands = [grouped, p_pad]
    for wf, shift in folded:
        in_specs.append(_const_block_spec(wf.shape))
        in_specs.append(_const_block_spec(shift.shape))
        operands += [wf, shift]

    flops = 2 * Mp * sum(w.shape[0] * w.shape[1] for w, _ in folded)
    bytes_accessed = sum(int(np.prod(a.shape)) * a.dtype.itemsize for a in operands) \
        + Mp * c_out_p * 4

    out = pl.pallas_call(
        make_local_agg_kernel(K, len(folded), compute_dtype),
        out_shape=jax.ShapeDtypeStruct((Mp, c_out_p), jnp.float32),
        grid_spec=pltpu.PrefetchScalarGridSpec(
            num_scalar_prefetch=0,
            grid=(Mp // tm,),
            in_specs=in_specs,
            out_specs=pl.BlockSpec((tm, c_out_p), lambda i: (i, 0)),
        ),
        compiler_params=pltpu.CompilerParams(
            dimension_semantics=("parallel",),     # shards M-tiles across both TCs on v7x
            vmem_limit_bytes=vmem_limit,
        ),
        cost_estimate=pl.CostEstimate(flops=flops, transcendentals=0,
                                      bytes_accessed=int(bytes_accessed)),
    )(*operands)
    return out[:M, :c_out]


# ---------------- glue: same-set kNN grouping (registry grouper stand-in) ----------------

def knn_same_batch(p, o, k):
    """kNN of every point among points of the same batch segment (target set == source set)."""
    N = p.shape[0]
    batch = jnp.searchsorted(o, jnp.arange(N), side="right")
    d2 = jnp.sum((p[:, None, :] - p[None, :, :]) ** 2, axis=-1)       # (N, N)
    d2 = jnp.where(batch[:, None] == batch[None, :], d2, jnp.inf)
    _, idx = jax.lax.top_k(-d2, k)
    valid = batch[idx] == batch[:, None]                               # guard short segments
    idx = jnp.where(valid, idx, jnp.arange(N, dtype=idx.dtype)[:, None])
    return idx                                                         # (N, K)


def local_aggregation_forward(p, x, o, layers, k=4, **kw):
    nbr_idx = knn_same_batch(p, o, k)                                  # (N, K)
    cd = kw.get("compute_dtype", jnp.bfloat16)
    x_cat = jnp.concatenate([p, x], axis=-1)                           # (N, 3+C_in) = [xyz||feat]
    # Single gathered stream, cast to bf16 BEFORE the gather (halves its HBM bytes),
    # laid out (K, N, Cf) so K stays off the vreg axes; rel-xyz is applied in-kernel.
    grouped = x_cat.astype(cd)[nbr_idx.T]                              # (K, N, Cf)
    return local_aggregation_pallas(grouped, p, layers, **kw)


if __name__ == "__main__":
    key = jax.random.PRNGKey(0)
    N, C_in, K = 32, 4, 4
    channels = [C_in, 32, 32]     # LocalAggregation(channels=[4,32,32]) -> MLP(7,32), MLP(32,32)
    kp, kx, kw_ = jax.random.split(key, 3)

    # pxo inputs: 2 batch segments of 16 points each
    p = jax.random.normal(kp, (N, 3), dtype=jnp.float32)
    x = jax.random.normal(kx, (N, C_in), dtype=jnp.float32)
    o = jnp.array([16, 32], dtype=jnp.int32)

    # convs parameters (Linear bias=False + eval BatchNorm1d + ReLU per layer)
    chans = list(channels)
    chans[0] = chans[0] + 3                     # channels[0] += 3 (with_xyz)
    layers = []
    wkeys = jax.random.split(kw_, len(chans) - 1)
    for i in range(len(chans) - 1):
        cin, cout = chans[i], chans[i + 1]
        w = jax.random.normal(wkeys[i], (cin, cout), dtype=jnp.float32) / np.sqrt(cin)
        gamma = 1.0 + 0.1 * jnp.arange(cout, dtype=jnp.float32)
        beta = 0.01 * jnp.arange(cout, dtype=jnp.float32)
        mean = 0.05 * jnp.arange(cout, dtype=jnp.float32)
        var = 1.0 + 0.02 * jnp.arange(cout, dtype=jnp.float32)
        layers.append((w, gamma, beta, mean, var))

    fwd = jax.jit(lambda p_, x_: local_aggregation_forward(p_, x_, o, layers, k=K))
    y = jax.block_until_ready(fwd(p, x))

    # --- reference 1: exact f32 forward of the original module (bf16-tolerant sanity check) ---
    nbr_idx = knn_same_batch(p, o, K)
    rel = p[nbr_idx] - p[:, None, :]
    ref = jnp.max(jnp.concatenate([rel, x[nbr_idx]], axis=-1), axis=1)
    for (w, gamma, beta, mean, var) in layers:
        z = ref @ w
        z = (z - mean) / jnp.sqrt(var + 1e-5) * gamma + beta
        ref = jnp.maximum(z, 0.0)

    # --- reference 2: bf16-matched path (same BN folding / casts as the kernel) ---
    Cf = 3 + C_in
    folded = _fold_bn_layers(layers, Cf, 1e-5, 128, jnp.bfloat16)
    x_cat16 = jnp.concatenate([p, x], axis=-1).astype(jnp.bfloat16)
    pooled = jnp.max(x_cat16[nbr_idx.T].astype(jnp.float32), axis=0)     # (N, Cf)
    p_pad = jnp.pad(p, ((0, 0), (0, Cf - 3)))
    yb = (pooled - p_pad).astype(jnp.bfloat16)
    for li, (wf, shift) in enumerate(folded):
        z = jnp.maximum(jnp.dot(yb, wf, preferred_element_type=jnp.float32) + shift, 0.0)
        yb = z.astype(jnp.bfloat16) if li + 1 < len(folded) else z
    ref16 = yb[:, :channels[-1]]

    assert y.shape == (N, channels[-1])
    err16 = float(jnp.max(jnp.abs(y - ref16)))
    err32 = float(jnp.max(jnp.abs(y - ref)))
    assert jnp.allclose(y, ref16, atol=1e-2, rtol=1e-2), err16
    assert jnp.allclose(y, ref, atol=2e-1, rtol=1e-1), err32
    print("KERNEL_OK")
</pallas_src>

<mosaic_0001>
module attributes {stable_mosaic.version = 11 : i64} {
  func.func @kernel(%arg0: i32, %arg1: memref<4x16x7xbf16, #tpu.memory_space<vmem>>, %arg2: memref<16x7xf32, #tpu.memory_space<vmem>>, %arg3: memref<7x128xbf16, #tpu.memory_space<vmem>>, %arg4: memref<1x128xf32, #tpu.memory_space<vmem>>, %arg5: memref<128x128xbf16, #tpu.memory_space<vmem>>, %arg6: memref<1x128xf32, #tpu.memory_space<vmem>>, %arg7: memref<16x128xf32, #tpu.memory_space<vmem>>) attributes {dimension_semantics = [#tpu.dimension_semantics<parallel>], iteration_bounds = array<i64: 2>, scalar_prefetch = 0 : i64, scratch_operands = 0 : i64, tpu.core_type = #tpu.core_type<tc>, window_params = [{transform_indices = @transform_0, window_bounds = array<i64: 4, 16, 7>}, {transform_indices = @transform_1, window_bounds = array<i64: 16, 7>}, {pipeline_mode = #tpu.pipeline_mode<synchronous>, transform_indices = @transform_2, window_bounds = array<i64: 7, 128>}, {pipeline_mode = #tpu.pipeline_mode<synchronous>, transform_indices = @transform_3, window_bounds = array<i64: 1, 128>}, {pipeline_mode = #tpu.pipeline_mode<synchronous>, transform_indices = @transform_4, window_bounds = array<i64: 128, 128>}, {pipeline_mode = #tpu.pipeline_mode<synchronous>, transform_indices = @transform_5, window_bounds = array<i64: 1, 128>}, {transform_indices = @transform_6, window_bounds = array<i64: 16, 128>}]} {
    %c0 = arith.constant 0 : index
    %c0_0 = arith.constant 0 : index
    %c0_1 = arith.constant 0 : index
    %0 = vector.load %arg1[%c0, %c0_0, %c0_1] : memref<4x16x7xbf16, #tpu.memory_space<vmem>>, vector<1x16x7xbf16>
    %1 = vector.shape_cast %0 : vector<1x16x7xbf16> to vector<16x7xbf16>
    %2 = arith.extf %1 : vector<16x7xbf16> to vector<16x7xf32>
    %c1 = arith.constant 1 : index
    %c0_2 = arith.constant 0 : index
    %c0_3 = arith.constant 0 : index
    %3 = vector.load %arg1[%c1, %c0_2, %c0_3] : memref<4x16x7xbf16, #tpu.memory_space<vmem>>, vector<1x16x7xbf16>
    %4 = vector.shape_cast %3 : vector<1x16x7xbf16> to vector<16x7xbf16>
    %5 = arith.extf %4 : vector<16x7xbf16> to vector<16x7xf32>
    %c2 = arith.constant 2 : index
    %c0_4 = arith.constant 0 : index
    %c0_5 = arith.constant 0 : index
    %6 = vector.load %arg1[%c2, %c0_4, %c0_5] : memref<4x16x7xbf16, #tpu.memory_space<vmem>>, vector<1x16x7xbf16>
    %7 = vector.shape_cast %6 : vector<1x16x7xbf16> to vector<16x7xbf16>
    %8 = arith.extf %7 : vector<16x7xbf16> to vector<16x7xf32>
    %c3 = arith.constant 3 : index
    %c0_6 = arith.constant 0 : index
    %c0_7 = arith.constant 0 : index
    %9 = vector.load %arg1[%c3, %c0_6, %c0_7] : memref<4x16x7xbf16, #tpu.memory_space<vmem>>, vector<1x16x7xbf16>
    %10 = vector.shape_cast %9 : vector<1x16x7xbf16> to vector<16x7xbf16>
    %11 = arith.extf %10 : vector<16x7xbf16> to vector<16x7xf32>
    %12 = arith.maximumf %2, %5 : vector<16x7xf32>
    %13 = arith.maximumf %8, %11 : vector<16x7xf32>
    %14 = arith.maximumf %12, %13 : vector<16x7xf32>
    %c0_8 = arith.constant 0 : index
    %c0_9 = arith.constant 0 : index
    %15 = vector.load %arg2[%c0_8, %c0_9] : memref<16x7xf32, #tpu.memory_space<vmem>>, vector<16x7xf32>
    %16 = arith.subf %14, %15 : vector<16x7xf32>
    %17 = arith.truncf %16 : vector<16x7xf32> to vector<16x7xbf16>
    %c0_10 = arith.constant 0 : index
    %c0_11 = arith.constant 0 : index
    %18 = vector.load %arg3[%c0_10, %c0_11] : memref<7x128xbf16, #tpu.memory_space<vmem>>, vector<7x128xbf16>
    %cst = arith.constant dense<0.000000e+00> : vector<16x128xf32>
    %19 = tpu.matmul %17, %18, %cst {dimension_numbers = #tpu.dot_dimension_numbers<[1], [0], [0], [1], [0, 0, 1, 1], [], []>} : vector<16x7xbf16>, vector<7x128xbf16>, vector<16x128xf32> -> vector<16x128xf32>
    %c0_12 = arith.constant 0 : index
    %c0_13 = arith.constant 0 : index
    %20 = vector.load %arg4[%c0_12, %c0_13] : memref<1x128xf32, #tpu.memory_space<vmem>>, vector<1x128xf32>
    %21 = vector.broadcast %20 : vector<1x128xf32> to vector<16x128xf32>
    %22 = arith.addf %19, %21 : vector<16x128xf32>
    %cst_14 = arith.constant 0.000000e+00 : f32
    %23 = vector.broadcast %cst_14 : f32 to vector<16x128xf32>
    %24 = arith.maximumf %22, %23 : vector<16x128xf32>
    %25 = arith.truncf %24 : vector<16x128xf32> to vector<16x128xbf16>
    %c0_15 = arith.constant 0 : index
    %c0_16 = arith.constant 0 : index
    %26 = vector.load %arg5[%c0_15, %c0_16] : memref<128x128xbf16, #tpu.memory_space<vmem>>, vector<128x128xbf16>
    %cst_17 = arith.constant dense<0.000000e+00> : vector<16x128xf32>
    %27 = tpu.matmul %25, %26, %cst_17 {dimension_numbers = #tpu.dot_dimension_numbers<[1], [0], [0], [1], [0, 0, 1, 1], [], []>} : vector<16x128xbf16>, vector<128x128xbf16>, vector<16x128xf32> -> vector<16x128xf32>
    %c0_18 = arith.constant 0 : index
    %c0_19 = arith.constant 0 : index
    %28 = vector.load %arg6[%c0_18, %c0_19] : memref<1x128xf32, #tpu.memory_space<vmem>>, vector<1x128xf32>
    %29 = vector.broadcast %28 : vector<1x128xf32> to vector<16x128xf32>
    %30 = arith.addf %27, %29 : vector<16x128xf32>
    %cst_20 = arith.constant 0.000000e+00 : f32
    %31 = vector.broadcast %cst_20 : f32 to vector<16x128xf32>
    %32 = arith.maximumf %30, %31 : vector<16x128xf32>
    %c0_21 = arith.constant 0 : index
    %c0_22 = arith.constant 0 : index
    %33 = vector.load %arg7[%c0_21, %c0_22] : memref<16x128xf32, #tpu.memory_space<vmem>>, vector<16x128xf32>
    tpu.vector_store %arg7[%c0_21, %c0_22], %32 {strides = array<i32>} : memref<16x128xf32, #tpu.memory_space<vmem>>, vector<16x128xf32>,
    return
  }
  func.func @transform_0(%arg0: i32) -> (i32, i32, i32) {
    %c0_i32 = arith.constant 0 : i32
    %c0_i32_0 = arith.constant 0 : i32
    %c0_i32_1 = arith.constant 0 : i32
    return %c0_i32, %arg0, %c0_i32_0 : i32, i32, i32
  }
  func.func @transform_1(%arg0: i32) -> (i32, i32) {
    %c0_i32 = arith.constant 0 : i32
    %c0_i32_0 = arith.constant 0 : i32
    return %arg0, %c0_i32 : i32, i32
  }
  func.func @transform_2(%arg0: i32) -> (i32, i32) {
    %c0_i32 = arith.constant 0 : i32
    %c0_i32_0 = arith.constant 0 : i32
    %c0_i32_1 = arith.constant 0 : i32
    return %c0_i32, %c0_i32_0 : i32, i32
  }
  func.func @transform_3(%arg0: i32) -> (i32, i32) {
    %c0_i32 = arith.constant 0 : i32
    %c0_i32_0 = arith.constant 0 : i32
    %c0_i32_1 = arith.constant 0 : i32
    return %c0_i32, %c0_i32_0 : i32, i32
  }
  func.func @transform_4(%arg0: i32) -> (i32, i32) {
    %c0_i32 = arith.constant 0 : i32
    %c0_i32_0 = arith.constant 0 : i32
    %c0_i32_1 = arith.constant 0 : i32
    return %c0_i32, %c0_i32_0 : i32, i32
  }
  func.func @transform_5(%arg0: i32) -> (i32, i32) {
    %c0_i32 = arith.constant 0 : i32
    %c0_i32_0 = arith.constant 0 : i32
    %c0_i32_1 = arith.constant 0 : i32
    return %c0_i32, %c0_i32_0 : i32, i32
  }
  func.func @transform_6(%arg0: i32) -> (i32, i32) {
    %c0_i32 = arith.constant 0 : i32
    %c0_i32_0 = arith.constant 0 : i32
    return %arg0, %c0_i32 : i32, i32
  }
}

</mosaic_0001>

<llo_original>
// kernel: custom-call.1
$region0: #{custom-call.1}
  %s0 = inlined_call_operand.vmem [shape: u32[32], index: 0, kind: output, shape index: {}]

// kernel: _lambda_.1
$region0: #{_lambda_.1}
  #allocation0 [shape = 'u32[]', space=smem, size = 0x4, offset = 0x4, fixed_abs, tag = 'smem constant byte address 0x4 - core index']
  #allocation1 [shape = 'u32[72,128]{1,0:T(1,128)}', space=vmem, size = 0x9000, scoped, tag = 'internal scratch']
  %s0 = inlined_call_operand.vmem [shape: bf16[4,32,7], index: 0, kind: input, shape index: {}]
  %s1 = inlined_call_operand.vmem [shape: f32[32,7], index: 1, kind: input, shape index: {}]
  %s2 = inlined_call_operand.vmem [shape: bf16[7,128], index: 2, kind: input, shape index: {}]
  %s3 = inlined_call_operand.vmem [shape: f32[1,128], index: 3, kind: input, shape index: {}, may-alias: {3,5}]
  %s4 = inlined_call_operand.vmem [shape: bf16[128,128], index: 4, kind: input, shape index: {}]
  %s5 = inlined_call_operand.vmem [shape: f32[1,128], index: 5, kind: input, shape index: {}, may-alias: {3,5}]
  %s6 = inlined_call_operand.hbm [shape: f32[32,128], index: 6, kind: output, shape index: {}]
  %s7 = sld [smem:[#allocation0]]
  $region98: #{_lambda_.1} parent=0
    _
  %s9 = ssub.s32 1, %s7
  %s10 = scalar_select 0, %s9, %s7
  $region1: #{_lambda_.1} parent=0
    #allocation2 [shape = 'u8[32768]{0}', space=vmem, size = 0x8000, scoped, tag = 'input window, operand 0']
    #allocation3 [shape = 'u8[16384]{0}', space=vmem, size = 0x4000, scoped, tag = 'output window, operand 0']
    #allocation4 [shape = 's32[2]{0}', space=sflag, size = 0x8, scoped, tag = 'scoped memory for _lambda_.1']
    %11 = vsyncpa [#allocation4], 0
    %s12 = scalar_lea.sflag [#allocation4], 1
    %13 = vsyncpa %s12, 0
    loop: start=0, step=1, limit=4
    $region2: #{_lambda_.1} parent=1 // loop_pre_header
      _
    $region3: #{_lambda_.1} parent=1 // loop_header
      %s15 = sphi 0, %s19
      %p16 = scmp.ge.s32.totalorder %s15, 4
      %s25 = sphi 0, %s27
      %s28 = sphi 0, %s25
      %s29 = sphi 0, %s28
      %s45 = sphi 0, %s29
      %s51 = sphi 0, %s53
      %s54 = sphi 0, %s51
      %s55 = sphi 0, %s54
      %s71 = sphi 0, %s55
      %s75 = sphi 0, %s75
      %s77 = sphi 0, %s75
      %s78 = sphi 0, %s77
      %s92 = sphi 0, %s78
      %s96 = sphi 0, %s96
      %s98 = sphi 0, %s96
      %s99 = sphi 0, %s98
      %s113 = sphi 0, %s99
      %s117 = sphi 0, %s117
      %s119 = sphi 0, %s117
      %s120 = sphi 0, %s119
      %s134 = sphi 0, %s120
      %s138 = sphi 0, %s138
      %s140 = sphi 0, %s138
      %s141 = sphi 0, %s140
      %s155 = sphi 0, %s141
      %s161 = sphi 0, %s163
      %s164 = sphi 0, %s161
      %s165 = sphi 0, %s164
      %s181 = sphi 0, %s165
    $region4: #{_lambda_.1} parent=1 // loop_header_branch
      %18 = sbr.rel (%p16) target = $region8
    $region5: #{_lambda_.1} parent=1 // loop_body
      %s20 = ssub.s32 %s15, 1
      %s21 = ssub.s32 %s15, 2
      %s22 = sadd.s32 %s15, 1
      %s23 = ssub.s32 %s15, %s22
      %p24 = scmp.eq.s32.totalorder %s23, 0
      %s26 = sadd.s32 %s25, 1
      %s27 = scalar_select %p24, %s25, %s26
      %p30 = pneg %p24
      %p31 = scmp.eq.s32.totalorder %s15, 1
      %p32 = por %p30, %p31
      %p33 = scmp.ne.s32.totalorder %s25, %s28
      %p34 = scmp.eq.s32.totalorder %s15, 0
      %p35 = por %p33, %p34
      %p36 = scmp.ne.s32.totalorder %s25, %s28
      %p37 = scmp.eq.s32.totalorder %s20, 1
      %p38 = por %p36, %p37
      %p39 = scmp.ne.s32.totalorder %s28, %s29
      %p40 = scmp.eq.s32.totalorder %s20, 0
      %p41 = por %p39, %p40
      %p42 = scmp.ne.s32.totalorder %s28, %s29
      %p43 = scmp.eq.s32.totalorder %s21, 1
      %p44 = por %p42, %p43
      %p46 = scmp.ne.s32.totalorder %s29, %s45
      %p47 = scmp.eq.s32.totalorder %s21, 0
      %p48 = por %p46, %p47
      %s49 = ssub.s32 %s15, %s22
      %p50 = scmp.eq.s32.totalorder %s49, 0
      %s52 = sadd.s32 %s51, 1
      %s53 = scalar_select %p50, %s51, %s52
      %p56 = pneg %p50
      %p57 = scmp.eq.s32.totalorder %s15, 1
      %p58 = por %p56, %p57
      %p59 = scmp.ne.s32.totalorder %s51, %s54
      %p60 = scmp.eq.s32.totalorder %s15, 0
      %p61 = por %p59, %p60
      %p62 = scmp.ne.s32.totalorder %s51, %s54
      %p63 = scmp.eq.s32.totalorder %s20, 1
      %p64 = por %p62, %p63
      %p65 = scmp.ne.s32.totalorder %s54, %s55
      %p66 = scmp.eq.s32.totalorder %s20, 0
      %p67 = por %p65, %p66
      %p68 = scmp.ne.s32.totalorder %s54, %s55
      %p69 = scmp.eq.s32.totalorder %s21, 1
      %p70 = por %p68, %p69
      %p72 = scmp.ne.s32.totalorder %s55, %s71
      %p73 = scmp.eq.s32.totalorder %s21, 0
      %p74 = por %p72, %p73
      %s76 = sadd.s32 %s75, 1
      %p79 = scmp.eq.s32.totalorder %s15, 1
      %p80 = scmp.ne.s32.totalorder %s75, %s77
      %p81 = scmp.eq.s32.totalorder %s15, 0
      %p82 = por %p80, %p81
      %p83 = scmp.ne.s32.totalorder %s75, %s77
      %p84 = scmp.eq.s32.totalorder %s20, 1
      %p85 = por %p83, %p84
      %p86 = scmp.ne.s32.totalorder %s77, %s78
      %p87 = scmp.eq.s32.totalorder %s20, 0
      %p88 = por %p86, %p87
      %p89 = scmp.ne.s32.totalorder %s77, %s78
      %p90 = scmp.eq.s32.totalorder %s21, 1
      %p91 = por %p89, %p90
      %p93 = scmp.ne.s32.totalorder %s78, %s92
      %p94 = scmp.eq.s32.totalorder %s21, 0
      %p95 = por %p93, %p94
      %s97 = sadd.s32 %s96, 1
      %p100 = scmp.eq.s32.totalorder %s15, 1
      %p101 = scmp.ne.s32.totalorder %s96, %s98
      %p102 = scmp.eq.s32.totalorder %s15, 0
      %p103 = por %p101, %p102
      %p104 = scmp.ne.s32.totalorder %s96, %s98
      %p105 = scmp.eq.s32.totalorder %s20, 1
      %p106 = por %p104, %p105
      %p107 = scmp.ne.s32.totalorder %s98, %s99
      %p108 = scmp.eq.s32.totalorder %s20, 0
      %p109 = por %p107, %p108
      %p110 = scmp.ne.s32.totalorder %s98, %s99
      %p111 = scmp.eq.s32.totalorder %s21, 1
      %p112 = por %p110, %p111
      %p114 = scmp.ne.s32.totalorder %s99, %s113
      %p115 = scmp.eq.s32.totalorder %s21, 0
      %p116 = por %p114, %p115
      %s118 = sadd.s32 %s117, 1
      %p121 = scmp.eq.s32.totalorder %s15, 1
      %p122 = scmp.ne.s32.totalorder %s117, %s119
      %p123 = scmp.eq.s32.totalorder %s15, 0
      %p124 = por %p122, %p123
      %p125 = scmp.ne.s32.totalorder %s117, %s119
      %p126 = scmp.eq.s32.totalorder %s20, 1
      %p127 = por %p125, %p126
      %p128 = scmp.ne.s32.totalorder %s119, %s120
      %p129 = scmp.eq.s32.totalorder %s20, 0
      %p130 = por %p128, %p129
      %p131 = scmp.ne.s32.totalorder %s119, %s120
      %p132 = scmp.eq.s32.totalorder %s21, 1
      %p133 = por %p131, %p132
      %p135 = scmp.ne.s32.totalorder %s120, %s134
      %p136 = scmp.eq.s32.totalorder %s21, 0
      %p137 = por %p135, %p136
      %s139 = sadd.s32 %s138, 1
      %p142 = scmp.eq.s32.totalorder %s15, 1
      %p143 = scmp.ne.s32.totalorder %s138, %s140
      %p144 = scmp.eq.s32.totalorder %s15, 0
      %p145 = por %p143, %p144
      %p146 = scmp.ne.s32.totalorder %s138, %s140
      %p147 = scmp.eq.s32.totalorder %s20, 1
      %p148 = por %p146, %p147
      %p149 = scmp.ne.s32.totalorder %s140, %s141
      %p150 = scmp.eq.s32.totalorder %s20, 0
      %p151 = por %p149, %p150
      %p152 = scmp.ne.s32.totalorder %s140, %s141
      %p153 = scmp.eq.s32.totalorder %s21, 1
      %p154 = por %p152, %p153
      %p156 = scmp.ne.s32.totalorder %s141, %s155
      %p157 = scmp.eq.s32.totalorder %s21, 0
      %p158 = por %p156, %p157
      %s159 = ssub.s32 %s15, %s22
      %p160 = scmp.eq.s32.totalorder %s159, 0
      %s162 = sadd.s32 %s161, 1
      %s163 = scalar_select %p160, %s161, %s162
      %p166 = pneg %p160
      %p167 = scmp.eq.s32.totalorder %s15, 1
      %p168 = por %p166, %p167
      %p169 = scmp.ne.s32.totalorder %s161, %s164
      %p170 = scmp.eq.s32.totalorder %s15, 0
      %p171 = por %p169, %p170
      %p172 = scmp.ne.s32.totalorder %s161, %s164
      %p173 = scmp.eq.s32.totalorder %s20, 1
      %p174 = por %p172, %p173
      %p175 = scmp.ne.s32.totalorder %s164, %s165
      %p176 = scmp.eq.s32.totalorder %s20, 0
      %p177 = por %p175, %p176
      %p178 = scmp.ne.s32.totalorder %s164, %s165
      %p179 = scmp.eq.s32.totalorder %s21, 1
      %p180 = por %p178, %p179
      %p182 = scmp.ne.s32.totalorder %s165, %s181
      %p183 = scmp.eq.s32.totalorder %s21, 0
      %p184 = por %p182, %p183
      %p185 = scmp.le.s32.totalorder 1, %s15
      %p186 = scmp.lt.s32.totalorder %s15, 3
      %p187 = pnand %p185, %p186
      %p188 = pneg %p187
      // Predicated region
      $region9: #{_lambda_.1} parent=5 // pred_check
        _
      $region10: #{_lambda_.1} parent=5 // pred_check_branch
        %190 = sbr.rel (%p187) target = $region12
      $region11: #{_lambda_.1} parent=5 // pred_region
        %s191 = ssub.s32 %s15, 1
        // Predicated region
        $region13: #{_lambda_.1} parent=11 // pred_check
          %p192 = pneg %p88
        $region14: #{_lambda_.1} parent=11 // pred_check_branch
          %194 = sbr.rel (%p192) target = $region16
        $region15: #{_lambda_.1} parent=11 // pred_region
          _
        $region16: #{_lambda_.1} parent=11 // pred_fallthru
          _
        // Predicated region
        $region17: #{_lambda_.1} parent=11 // pred_check
          %p195 = pneg %p109
        $region18: #{_lambda_.1} parent=11 // pred_check_branch
          %197 = sbr.rel (%p195) target = $region20
        $region19: #{_lambda_.1} parent=11 // pred_region
          _
        $region20: #{_lambda_.1} parent=11 // pred_fallthru
          _
        // Predicated region
        $region21: #{_lambda_.1} parent=11 // pred_check
          %p198 = pneg %p130
        $region22: #{_lambda_.1} parent=11 // pred_check_branch
          %200 = sbr.rel (%p198) target = $region24
        $region23: #{_lambda_.1} parent=11 // pred_region
          _
        $region24: #{_lambda_.1} parent=11 // pred_fallthru
          _
        // Predicated region
        $region25: #{_lambda_.1} parent=11 // pred_check
          %p201 = pneg %p151
        $region26: #{_lambda_.1} parent=11 // pred_check_branch
          %203 = sbr.rel (%p201) target = $region28
        $region27: #{_lambda_.1} parent=11 // pred_region
          _
        $region28: #{_lambda_.1} parent=11 // pred_fallthru
          _
      $region12: #{_lambda_.1} parent=5 // pred_fallthru
        _
      %p204 = scmp.lt.s32.totalorder %s15, 2
      // Predicated region
      $region29: #{_lambda_.1} parent=5 // pred_check
        %p205 = pneg %p204
      $region30: #{_lambda_.1} parent=5 // pred_check_branch
        %207 = sbr.rel (%p205) target = $region32
      $region31: #{_lambda_.1} parent=5 // pred_region
        // Predicated region
        $region33: #{_lambda_.1} parent=31 // pred_check
          %p208 = pneg %p35
        $region34: #{_lambda_.1} parent=31 // pred_check_branch
          %210 = sbr.rel (%p208) target = $region36
        $region35: #{_lambda_.1} parent=31 // pred_region
          %s211 = sand.u32 %s25, 1
          %s212 = sand.u32 %s25, 1
          %s213 = smul.addr %s212, 32
          %s214 = scalar_lea.vmem [#allocation2], %s213
          %s215 = smul.u32 2, %s15
          %s216 = smul.addr %s215, 4
          %s217 = scalar_lea.vmem %s0, %s216
          // Predicated region
          $region37: #{_lambda_.1} parent=35 // pred_check
            _
          $region38: #{_lambda_.1} parent=35 // pred_check_branch
            %219 = sbr.rel (0) target = $region40
          $region39: #{_lambda_.1} parent=35 // pred_region
            // Predicated region
            $region41: #{_lambda_.1} parent=39 // pred_check
              _
            $region42: #{_lambda_.1} parent=39 // pred_check_branch
              %221 = sbr.rel target = $region44
            $region43: #{_lambda_.1} parent=39 // pred_region
              // Predicated region
              $region56: #{_lambda_.1} parent=43 // pred_check
                _
              $region57: #{_lambda_.1} parent=43 // pred_check_branch
                %251 = sbr.rel (0) target = $region59
              $region58: #{_lambda_.1} parent=43 // pred_region
                loop: start=0, step=1, limit=1
                $region60: #{_lambda_.1} parent=58 // loop_pre_header
                  _
                $region61: #{_lambda_.1} parent=58 // loop_header
                  %s253 = sphi 0, %s257
                  %p254 = scmp.ge.s32.totalorder %s253, 1
                  %s258 = sphi %s217, %s217
                  %s259 = sphi %s214, %s214
                $region62: #{_lambda_.1} parent=58 // loop_header_branch
                  %256 = sbr.rel (%p254) target = $region66
                $region63: #{_lambda_.1} parent=58 // loop_body
                  _
                $region64: #{_lambda_.1} parent=58 // loop_footer
                  %s257 = sadd.s32 1, %s253
                $region65: #{_lambda_.1} parent=58 // loop_footer_branch
                  %252 = sbr.rel target = $region61
                $region66: #{_lambda_.1} parent=58 // loop_exit
                  _
                %s261 = ssub.s32 16, 1
                loop: start=0, step=1, limit=1
                $region67: #{_lambda_.1} parent=58 // loop_pre_header
                  _
                $region68: #{_lambda_.1} parent=58 // loop_header
                  %s263 = sphi 0, %s267
                  %p264 = scmp.ge.s32.totalorder %s263, 1
                  %s268 = sphi %s217, %s217
                  %s269 = sphi %s214, %s214
                $region69: #{_lambda_.1} parent=58 // loop_header_branch
                  %266 = sbr.rel (%p264) target = $region73
                $region70: #{_lambda_.1} parent=58 // loop_body
                  %v270 = vld [vmem:[%s268] sm:%s261]
                  %271 = vst [vmem:[%s269] sm:%s261] %v270
                  %v272 = vld [vmem:[%s268 + $0x4] sm:%s261]
                  %273 = vst [vmem:[%s269 + $0x4] sm:%s261] %v272
                  %v274 = vld [vmem:[%s268 + $0x10] sm:%s261]
                  %275 = vst [vmem:[%s269 + $0x8] sm:%s261] %v274
                  %v276 = vld [vmem:[%s268 + $0x14] sm:%s261]
                  %277 = vst [vmem:[%s269 + $0xc] sm:%s261] %v276
                  %v278 = vld [vmem:[%s268 + $0x20] sm:%s261]
                  %279 = vst [vmem:[%s269 + $0x10] sm:%s261] %v278
                  %v280 = vld [vmem:[%s268 + $0x24] sm:%s261]
                  %281 = vst [vmem:[%s269 + $0x14] sm:%s261] %v280
                  %v282 = vld [vmem:[%s268 + $0x30] sm:%s261]
                  %283 = vst [vmem:[%s269 + $0x18] sm:%s261] %v282
                  %v284 = vld [vmem:[%s268 + $0x34] sm:%s261]
                  %285 = vst [vmem:[%s269 + $0x1c] sm:%s261] %v284
                $region71: #{_lambda_.1} parent=58 // loop_footer
                  %s267 = sadd.s32 1, %s263
                $region72: #{_lambda_.1} parent=58 // loop_footer_branch
                  %262 = sbr.rel target = $region68
                $region73: #{_lambda_.1} parent=58 // loop_exit
                  _
              $region59: #{_lambda_.1} parent=43 // pred_fallthru
                _
            $region44: #{_lambda_.1} parent=39 // pred_fallthru
              _
            // Predicated region
            $region45: #{_lambda_.1} parent=39 // pred_check
              _
            $region46: #{_lambda_.1} parent=39 // pred_check_branch
              %223 = sbr.rel (0) target = $region48
            $region47: #{_lambda_.1} parent=39 // pred_region
              %s225 = ssub.s32 16, 1
              loop: start=0, step=1, limit=1
              $region49: #{_lambda_.1} parent=47 // loop_pre_header
                _
              $region50: #{_lambda_.1} parent=47 // loop_header
                %s227 = sphi 0, %s231
                %p228 = scmp.ge.s32.totalorder %s227, 1
                %s232 = sphi %s217, %s217
                %s233 = sphi %s214, %s214
              $region51: #{_lambda_.1} parent=47 // loop_header_branch
                %230 = sbr.rel (%p228) target = $region55
              $region52: #{_lambda_.1} parent=47 // loop_body
                %v234 = vld [vmem:[%s232] sm:%s225]
                %235 = vst [vmem:[%s233] sm:%s225] %v234
                %v236 = vld [vmem:[%s232 + $0x4] sm:%s225]
                %237 = vst [vmem:[%s233 + $0x4] sm:%s225] %v236
                %v238 = vld [vmem:[%s232 + $0x10] sm:%s225]
                %239 = vst [vmem:[%s233 + $0x8] sm:%s225] %v238
                %v240 = vld [vmem:[%s232 + $0x14] sm:%s225]
                %241 = vst [vmem:[%s233 + $0xc] sm:%s225] %v240
                %v242 = vld [vmem:[%s232 + $0x20] sm:%s225]
                %243 = vst [vmem:[%s233 + $0x10] sm:%s225] %v242
                %v244 = vld [vmem:[%s232 + $0x24] sm:%s225]
                %245 = vst [vmem:[%s233 + $0x14] sm:%s225] %v244
                %v246 = vld [vmem:[%s232 + $0x30] sm:%s225]
                %247 = vst [vmem:[%s233 + $0x18] sm:%s225] %v246
                %v248 = vld [vmem:[%s232 + $0x34] sm:%s225]
                %249 = vst [vmem:[%s233 + $0x1c] sm:%s225] %v248
              $region53: #{_lambda_.1} parent=47 // loop_footer
                %s231 = sadd.s32 1, %s227
              $region54: #{_lambda_.1} parent=47 // loop_footer_branch
                %226 = sbr.rel target = $region50
              $region55: #{_lambda_.1} parent=47 // loop_exit
                _
            $region48: #{_lambda_.1} parent=39 // pred_fallthru
              _
          $region40: #{_lambda_.1} parent=35 // pred_fallthru
            _
          %286 = vnop
        $region36: #{_lambda_.1} parent=31 // pred_fallthru
          _
        // Predicated region
        $region74: #{_lambda_.1} parent=31 // pred_check
          %p287 = pneg %p61
        $region75: #{_lambda_.1} parent=31 // pred_check_branch
          %289 = sbr.rel (%p287) target = $region77
        $region76: #{_lambda_.1} parent=31 // pred_region
          %s290 = smul.u32 2, %s15
          %p291 = scmp.lt.s32.totalorder %s290, 3
          %s292 = scalar_select %p291, %s290, 3
          %s293 = smul.addr %s292, 8
          %s294 = scalar_lea.vmem %s1, %s293
          %s295 = smul.u32 2, %s15
        $region77: #{_lambda_.1} parent=31 // pred_fallthru
          _
      $region32: #{_lambda_.1} parent=5 // pred_fallthru
        _
      %p296 = scmp.le.s32.totalorder 1, %s15
      %p297 = scmp.lt.s32.totalorder %s15, 3
      %p298 = pnand %p296, %p297
      %p299 = pneg %p298
      // Predicated region
      $region78: #{_lambda_.1} parent=5 // pred_check
        _
      $region79: #{_lambda_.1} parent=5 // pred_check_branch
        %301 = sbr.rel (%p298) target = $region81
      $region80: #{_lambda_.1} parent=5 // pred_region
        %s302 = ssub.s32 %s15, 1
        %s303 = sand.u32 %s28, 1
        %s304 = sand.u32 %s28, 1
        %s305 = smul.addr %s304, 32
        %s306 = scalar_lea.vmem [#allocation2], %s305
        // Predicated region
        $region82: #{_lambda_.1} parent=80 // pred_check
          %p307 = pneg %p41
        $region83: #{_lambda_.1} parent=80 // pred_check_branch
          %309 = sbr.rel (%p307) target = $region85
        $region84: #{_lambda_.1} parent=80 // pred_region
          _
        $region85: #{_lambda_.1} parent=80 // pred_fallthru
          _
        %s310 = sand.u32 %s28, 1
        %s311 = sand.u32 %s28, 1
        %s312 = smul.addr %s311, 32
        %s313 = scalar_lea.vmem [#allocation2], %s312
        %p314 = pneg %p41
        %p315 = pneg %p38
        %s316 = smul.u32 2, %s20
        %p317 = scmp.lt.s32.totalorder %s316, 3
        %s318 = scalar_select %p317, %s316, 3
        %s319 = smul.addr %s318, 8
        %s320 = scalar_lea.vmem %s1, %s319
        %p321 = pneg %p67
        %p322 = pneg %p64
        %p323 = pneg %p88
        %p324 = pneg %p85
        %p325 = pneg %p109
        %p326 = pneg %p106
        %p327 = pneg %p130
        %p328 = pneg %p127
        %p329 = pneg %p151
        %p330 = pneg %p148
        %p331 = pneg %p177
        %p332 = pneg %p174
        %s333 = sand.u32 %s164, 1
        %s334 = scalar_lea.sflag [#allocation4], %s333
        %s335 = sand.u32 %s164, 1
        %s336 = smul.addr %s335, 16
        %s337 = scalar_lea.vmem [#allocation3], %s336
        %s338 = smul.u32 2, %s20
        %s339 = smul.u32 2, %s20
        %p340 = scmp.lt.s32.totalorder %s339, 3
        %s341 = scalar_select %p340, %s339, 3
        %s342 = smul.addr %s341, 8
        %s343 = scalar_lea.vmem %s1, %s342
        %s344 = smul.u32 2, %s20
        %s345 = smul.u32 2, %s20
        %v347 = vld [vmem:[%s306] sm:$0xf]
        %v348 = vld [vmem:[%s306 + $0x4] sm:$0xf]
        %v349 = vunpack.c.l.bf16 %v347
        %v350 = vunpack.c.l.bf16 %v348
        %s351 = scalar_lea.vmem %s306, 8 [#allocation2]
        %v352 = vld [vmem:[%s351] sm:$0xf]
        %v353 = vld [vmem:[%s351 + $0x4] sm:$0xf]
        %v354 = vunpack.c.l.bf16 %v352
        %v355 = vunpack.c.l.bf16 %v353
        %s356 = scalar_lea.vmem %s306, 16 [#allocation2]
        %v357 = vld [vmem:[%s356] sm:$0xf]
        %v358 = vld [vmem:[%s356 + $0x4] sm:$0xf]
        %v359 = vunpack.c.l.bf16 %v357
        %v360 = vunpack.c.l.bf16 %v358
        %s361 = scalar_lea.vmem %s306, 24 [#allocation2]
        %v362 = vld [vmem:[%s361] sm:$0xf]
        %v363 = vld [vmem:[%s361 + $0x4] sm:$0xf]
        %v364 = vunpack.c.l.bf16 %v362
        %v365 = vunpack.c.l.bf16 %v363
        %v366 = vmax.f32 %v349, %v354
        %v367 = vmax.f32 %v350, %v355
        %v368 = vmax.f32 %v359, %v364
        %v369 = vmax.f32 %v360, %v365
        %v370 = vmax.f32 %v366, %v368
        %v371 = vmax.f32 %v367, %v369
        %v372 = vld [vmem:[%s343] sm:$0xff]
        %v373 = vld [vmem:[%s343 + $0x8] sm:$0xff]
        %v374 = vsub.f32 %v370, %v372
        %v375 = vsub.f32 %v371, %v373
        %v376 = vpack.c.bf16 %v375, %v374
        %v377 = vld [vmem:[%s2] sm:$0xf]
        %v378 = vld [vmem:[%s3] sm:$0x1]
        %v380 = vperm.slane %v378, 0
        %vm382 = vcmask 56320
        %v384 = vsel %vm382, %v376, 0
        %vm386 = vcmask 1042432
        %vm387 = vcmask 1043456
        %v388 = vsel %vm386, 4294967295, 65535
        %v389 = vsel %vm387, %v388, 0
        %v391 = vand.u32 %v377, %v389
        %393 = vmatpush.bf16.msra.mxu0 0
        %394 = vmatpush.bf16.msra.mxu0 0
        %395 = vmatpush.bf16.msra.mxu0 0
        %396 = vmatpush.bf16.msra.mxu0 0
        %397 = vmatpush.bf16.msra.mxu0 0
        %398 = vmatpush.bf16.msra.mxu0 0
        %399 = vmatpush.bf16.msra.mxu0 0
        %400 = vmatpush.bf16.msra.mxu0 %v391
        %401 = vmatmul.bf16.gmra.mxu0 %v384
        %v402 = vpop.f32.mrf.mxu0
        %v403 = vadd.f32 %v380, %v402
        %v404 = vpop.f32.mrf.mxu0
        %v405 = vadd.f32 %v380, %v404
        %406 = vdwg.mxu0
        %v407 = vmax.f32 %v403, 0.0
        %v408 = vmax.f32 %v405, 0.0
        %v409 = vpack.c.bf16 %v408, %v407
        %v410 = vld [vmem:[%s4] sm:$0xf]
        %v411 = vld [vmem:[%s4 + $0x4] sm:$0xf]
        %v412 = vld [vmem:[%s4 + $0x8] sm:$0xf]
        %v413 = vld [vmem:[%s4 + $0xc] sm:$0xf]
        %v414 = vld [vmem:[%s4 + $0x10] sm:$0xf]
        %v415 = vld [vmem:[%s4 + $0x14] sm:$0xf]
        %v416 = vld [vmem:[%s4 + $0x18] sm:$0xf]
        %v417 = vld [vmem:[%s4 + $0x1c] sm:$0xf]
        %v418 = vld [vmem:[%s4 + $0x20] sm:$0xf]
        %v419 = vld [vmem:[%s4 + $0x24] sm:$0xf]
        %v420 = vld [vmem:[%s4 + $0x28] sm:$0xf]
        %v421 = vld [vmem:[%s4 + $0x2c] sm:$0xf]
        %v422 = vld [vmem:[%s4 + $0x30] sm:$0xf]
        %v423 = vld [vmem:[%s4 + $0x34] sm:$0xf]
        %v424 = vld [vmem:[%s4 + $0x38] sm:$0xf]
        %v425 = vld [vmem:[%s4 + $0x3c] sm:$0xf]
        %v426 = vld [vmem:[%s5] sm:$0x1]
        %v428 = vperm.slane %v426, 0
        %v446 = vunpack.c.l.b16 %v410
        %v447 = vunpack.c.l.b16 %v411
        %v448 = vunpack.c.l.b16 %v412
        %v449 = vunpack.c.l.b16 %v413
        %v450 = vunpack.c.l.b16 %v414
        %v451 = vunpack.c.l.b16 %v415
        %v452 = vunpack.c.l.b16 %v416
        %v453 = vunpack.c.l.b16 %v417
        %v454 = vunpack.c.l.b16 %v418
        %v455 = vunpack.c.l.b16 %v419
        %v456 = vunpack.c.l.b16 %v420
        %v457 = vunpack.c.l.b16 %v421
        %v458 = vunpack.c.l.b16 %v422
        %v459 = vunpack.c.l.b16 %v423
        %v460 = vunpack.c.l.b16 %v424
        %v461 = vunpack.c.l.b16 %v425
        %v462 = vpack.c.b16 %v447, %v446
        %v463 = vpack.c.b16 %v449, %v448
        %v464 = vpack.c.b16 %v451, %v450
        %v465 = vpack.c.b16 %v453, %v452
        %v466 = vpack.c.b16 %v455, %v454
        %v467 = vpack.c.b16 %v457, %v456
        %v468 = vpack.c.b16 %v459, %v458
        %v469 = vpack.c.b16 %v461, %v460
        %478 = vmatpush.bf16.msra.mxu0 %v469
        %479 = vmatpush.bf16.msra.mxu0 %v468
        %480 = vmatpush.bf16.msra.mxu0 %v467
        %481 = vmatpush.bf16.msra.mxu0 %v466
        %482 = vmatpush.bf16.msra.mxu0 %v465
        %483 = vmatpush.bf16.msra.mxu0 %v464
        %484 = vmatpush.bf16.msra.mxu0 %v463
        %485 = vmatpush.bf16.msra.mxu0 %v462
        %486 = vmatmul.bf16.gmra.mxu0 %v409
        %v487 = vpop.f32.mrf.mxu0
        %v488 = vadd.f32 %v428, %v487
        %v489 = vpop.f32.mrf.mxu0
        %v490 = vadd.f32 %v428, %v489
        %491 = vdwg.mxu0
        %v492 = vmax.f32 %v488, 0.0
        %v493 = vmax.f32 %v490, 0.0
        %494 = vst [vmem:[%s337] sm:$0xff] %v492
        %495 = vst [vmem:[%s337 + $0x8] sm:$0xff] %v493
        %s496 = sand.u32 %s164, 1
        %s497 = scalar_lea.sflag [#allocation4], %s496
        %s498 = sand.u32 %s164, 1
        %s499 = smul.addr %s498, 16
        %s500 = scalar_lea.vmem [#allocation3], %s499
        // Predicated region
        $region86: #{_lambda_.1} parent=80 // pred_check
          %p501 = pneg %p174
        $region87: #{_lambda_.1} parent=80 // pred_check_branch
          %503 = sbr.rel (%p501) target = $region89
        $region88: #{_lambda_.1} parent=80 // pred_region
          %s504 = smul.u32 2, %s20
          %506 = vsyncadd %s497, 0
          %s507 = smul.addr %s504, 8
          %s508 = scalar_lea.hbm %s6, %s507
          %s509 = sshll.u32 %s500, 4
          %s510 = int_to_ptr.vmem [resolvable:$true] %s509
          %s511 = sshll.u32 %s508, 4
          %s512 = int_to_ptr.hbm [resolvable:$true] %s511
          %517 = dma.vmem_to_hbm [thread:$0]  %s510, 256, %s512, %s497, 128, 128, 8
        $region89: #{_lambda_.1} parent=80 // pred_fallthru
          _
      $region81: #{_lambda_.1} parent=5 // pred_fallthru
        _
      %p518 = scmp.le.s32.totalorder 2, %s15
      // Predicated region
      $region90: #{_lambda_.1} parent=5 // pred_check
        %p519 = pneg %p518
      $region91: #{_lambda_.1} parent=5 // pred_check_branch
        %521 = sbr.rel (%p519) target = $region93
      $region92: #{_lambda_.1} parent=5 // pred_region
        %s522 = ssub.s32 %s15, 2
        // Predicated region
        $region94: #{_lambda_.1} parent=92 // pred_check
          %p523 = pneg %p180
        $region95: #{_lambda_.1} parent=92 // pred_check_branch
          %525 = sbr.rel (%p523) target = $region97
        $region96: #{_lambda_.1} parent=92 // pred_region
          %s526 = sand.u32 %s165, 1
          %s527 = scalar_lea.sflag [#allocation4], %s526
          %s528 = sand.u32 %s165, 1
          %s529 = smul.addr %s528, 16
          %s530 = scalar_lea.vmem [#allocation3], %s529
          %532 = dma.done %s527, 256
        $region97: #{_lambda_.1} parent=92 // pred_fallthru
          _
      $region93: #{_lambda_.1} parent=5 // pred_fallthru
        _
    $region6: #{_lambda_.1} parent=1 // loop_footer
      %s19 = sadd.s32 1, %s15
    $region7: #{_lambda_.1} parent=1 // loop_footer_branch
      %14 = sbr.rel target = $region3
    $region8: #{_lambda_.1} parent=1 // loop_exit
      _
    %533 = vsyncpa [#allocation4], 1
    %s534 = scalar_lea.sflag [#allocation4], 1
    %535 = vsyncpa %s534, 1

</llo_original>
